<compile_context>
chip_gen: v5e
topology: v5e:2x2
jax: 0.10.0
libtpu: 0.0.40
codegen_flags: <defaults>
</compile_context>

<pallas_src>
import math
import numpy as np

import jax
import jax.numpy as jnp
from jax.experimental import pallas as pl
from jax.experimental.pallas import tpu as pltpu

HIGHEST = jax.lax.Precision.HIGHEST


# ---------------------------------------------------------------------------
# Shift index construction (numpy, identical to Modified_shift_gcn.shift)
# ---------------------------------------------------------------------------
def modified_shift_index(A, node_num, channels, weight):
    index_array = np.arange(0, node_num * channels).reshape(node_num, channels)
    index_copy = np.copy(index_array)
    A = A.copy()
    for i in range(node_num):
        current_A = A[i]
        current_A[i] = 0
        neighbors = np.nonzero(current_A)[0]
        j = 0
        counter_i = i + 1
        while j < channels:
            next_node = counter_i % node_num
            if j < weight:
                j += weight
            elif next_node == i:
                j += weight
                counter_i += 1
            elif next_node in neighbors:
                index_array[i][j:j + weight] = index_copy[next_node][j:j + weight]
                j += weight
                counter_i += 1
            else:
                index_array[i][j] = index_copy[next_node][j]
                j += 1
                counter_i += 1
    return index_array.flatten().astype(np.int32)


def _round_up(x, m):
    return ((x + m - 1) // m) * m


# ---------------------------------------------------------------------------
# Parameter folding (one-time, outside jit; collapses all static gathers / BN)
# ---------------------------------------------------------------------------
def fold_gcn(params, V, Cin, Cout):
    """GCN branch -> z = x_flat @ M + b  with x_flat in (NT, V*Cin) layout."""
    m = jnp.tanh(params['Feature_Mask']).reshape(V, Cin) + 1.0          # (V, Cin)
    si = params['shift_in'].reshape(V, Cin)                             # int32
    onehot_in = jax.nn.one_hot(si, V * Cin, dtype=jnp.float32)          # (V, Cin, V*Cin)
    wm = onehot_in * m[:, :, None]
    # M0[p, w*Cout + d] = sum_c 1[shift_in[w,c]==p] * m[w,c] * W[c,d]
    M0 = jnp.einsum('wcp,cd->pwd', wm, params['Linear_weight'],
                    precision=HIGHEST).reshape(V * Cin, V * Cout)
    bias_flat = jnp.tile(params['Linear_bias'].reshape(Cout), V)        # (V*Cout,)
    so = params['shift_out']
    scale = params['gcn_bn_scale']
    shift = params['gcn_bn_shift']
    M = jnp.take(M0, so, axis=1) * scale[None, :]                       # fold shift_out + bn
    b = jnp.take(bias_flat, so, axis=0) * scale + shift
    return M.astype(jnp.bfloat16), b.reshape(1, V * Cout)


def fold_tcn(params, V, C, *, use_blockdiag):
    """Shift_tcn branch -> out = relu(x1 @ W + bt) [* s2] + b2."""
    Wt = params['tcn_weight']          # (C, C) channels-last 1x1 conv
    bt = params['tcn_bias']            # (C,)
    s1, b1 = params['tcn_bn1_scale'], params['tcn_bn1_shift']
    s2, b2 = params['tcn_bn2_scale'], params['tcn_bn2_shift']

    Wt_eff = s1[:, None] * Wt                                            # bn1 -> conv
    bt_eff = jnp.dot(b1, Wt, precision=HIGHEST) + bt

    # relu(a) * s2 == relu(a * s2) when s2 > 0: fold bn2 scale into the conv.
    fold_s2 = bool(np.all(np.asarray(s2) > 0.0))
    if fold_s2:
        Wt_eff = Wt_eff * s2[None, :]
        bt_eff = bt_eff * s2
        s2_out = None
    else:
        s2_out = jnp.tile(s2, V).reshape(1, V * C)

    if use_blockdiag:
        # Tiny C: block-diagonal (V*C, V*C) so the whole branch is one matmul.
        W_out = jnp.kron(jnp.eye(V, dtype=jnp.float32), Wt_eff)
    else:
        # MXU-sized C: dense (C, C) applied to a (tile*V, C) reshape in-kernel.
        W_out = Wt_eff

    return (W_out.astype(jnp.bfloat16),
            jnp.tile(bt_eff, V).reshape(1, V * C),
            s2_out,
            jnp.tile(b2, V).reshape(1, V * C),
            fold_s2)


def fold_unit_params(params, V, Cin, Cout):
    use_blockdiag = Cout < 128
    gM, gb = fold_gcn(params, V, Cin, Cout)
    tW, tb, s2, b2, fold_s2 = fold_tcn(params, V, Cout, use_blockdiag=use_blockdiag)
    return dict(gM=gM, gb=gb, tW=tW, tb=tb, s2=s2, b2=b2,
                use_blockdiag=use_blockdiag, fold_s2=fold_s2, V=V, C=Cout)


# ---------------------------------------------------------------------------
# Fused Pallas kernel: whole TCN_GCN_unit per row tile of (tile_nt, V*C)
# ---------------------------------------------------------------------------
def make_fused_kernel(use_blockdiag, fold_s2, V, C):
    def kernel(*refs):
        if fold_s2:
            x_ref, gM_ref, gb_ref, tW_ref, tb_ref, b2_ref, o_ref = refs
            s2_ref = None
        else:
            x_ref, gM_ref, gb_ref, tW_ref, tb_ref, s2_ref, b2_ref, o_ref = refs

        x = x_ref[...]                                          # (tile, F) f32
        # GCN branch: folded shift_in + mask + linear + shift_out + bn.
        # bf16 MXU inputs, f32 accumulation (single-pass matmul).
        z = jnp.dot(x.astype(jnp.bfloat16), gM_ref[...],
                    preferred_element_type=jnp.float32) + gb_ref[...]
        x1 = jnp.maximum(z + x, 0.0)                            # gcn residual + relu

        # TCN branch: bn1 (and, if positive, bn2 scale) folded into the 1x1 conv.
        # TODO(synk): interleave row sub-chunks (lax.fori_loop unroll=True) so the
        # VPU epilogue of chunk i hides under the MXU of chunk i+1.
        if use_blockdiag:
            u = jnp.dot(x1.astype(jnp.bfloat16), tW_ref[...],
                        preferred_element_type=jnp.float32)
        else:
            tile = x1.shape[0]
            x1r = x1.astype(jnp.bfloat16).reshape(tile * V, C)
            u = jnp.dot(x1r, tW_ref[...],
                        preferred_element_type=jnp.float32).reshape(tile, V * C)
        u = jnp.maximum(u + tb_ref[...], 0.0)
        if s2_ref is not None:
            u = u * s2_ref[...]
        u = u + b2_ref[...]
        o_ref[...] = jnp.maximum(u + x, 0.0)                    # unit residual + relu
    return kernel


def fused_block(x_flat, fp, *, tile_nt=1024):
    NT, F = x_flat.shape
    V, C = fp['V'], fp['C']
    gM, gb, tW, tb, s2, b2 = fp['gM'], fp['gb'], fp['tW'], fp['tb'], fp['s2'], fp['b2']
    use_blockdiag, fold_s2 = fp['use_blockdiag'], fp['fold_s2']

    # --- VMEM-budget-aware tile cap (v7x: 64 MiB/TC; leave headroom) ---------
    weight_bytes = gM.size * gM.dtype.itemsize + tW.size * tW.dtype.itemsize
    # Single-buffer the grid-invariant weights only once they are big enough to
    # matter (never triggered at the small test F, so the hot path stays proven).
    single_buffer = (F >= 1024) and hasattr(pl, "Buffered")
    resident_weight_bytes = weight_bytes * (1 if single_buffer else 2)
    budget = 48 * 1024 * 1024
    act_bytes_per_row = 16 * F                       # in + out, double-buffered, f32
    tile_cap = max(8, ((budget - resident_weight_bytes) // act_bytes_per_row) // 8 * 8)
    tile_nt = max(8, min(tile_nt, tile_cap))

    # --- balanced tiles; >= 2 (even) so both v7x TensorCores get work --------
    n_tiles = max(2, pl.cdiv(NT, tile_nt))
    if n_tiles % 2:
        n_tiles += 1
    tile = _round_up(pl.cdiv(NT, n_tiles), 8)
    NT_pad = tile * n_tiles
    if NT_pad != NT:
        x_flat = jnp.pad(x_flat, ((0, NT_pad - NT), (0, 0)))

    const_map = lambda i: (0, 0)
    wkw = dict(pipeline_mode=pl.Buffered(1)) if single_buffer else {}

    operands = [x_flat, gM, gb, tW, tb]
    in_specs = [
        pl.BlockSpec((tile, F), lambda i: (i, 0)),               # activations
        pl.BlockSpec(gM.shape, const_map, **wkw),                # folded GCN matrix (bf16)
        pl.BlockSpec((1, F), const_map, **wkw),                  # folded GCN bias
        pl.BlockSpec(tW.shape, const_map, **wkw),                # folded TCN matrix (bf16)
        pl.BlockSpec((1, F), const_map, **wkw),                  # folded TCN bias
    ]
    if not fold_s2:
        operands.append(s2)
        in_specs.append(pl.BlockSpec((1, F), const_map, **wkw))  # bn2 scale
    operands.append(b2)
    in_specs.append(pl.BlockSpec((1, F), const_map, **wkw))      # bn2 shift

    # Cost estimate so XLA schedules the custom call against neighbours.
    gcn_flops = 2 * NT_pad * F * F
    tcn_flops = 2 * NT_pad * F * F if use_blockdiag else 2 * NT_pad * V * C * C
    cost = pl.CostEstimate(
        flops=int(gcn_flops + tcn_flops + 8 * NT_pad * F),
        transcendentals=0,
        bytes_accessed=int(2 * NT_pad * F * 4 + weight_bytes + 4 * F * 4),
    )

    vmem_need = resident_weight_bytes + 4 * tile * F * 4 + (2 << 20)
    vmem_limit = int(min(max(vmem_need, 32 << 20), 64 << 20))

    out = pl.pallas_call(
        make_fused_kernel(use_blockdiag, fold_s2, V, C),
        out_shape=jax.ShapeDtypeStruct((NT_pad, F), jnp.float32),
        grid=(n_tiles,),
        in_specs=in_specs,
        out_specs=pl.BlockSpec((tile, F), lambda i: (i, 0)),
        compiler_params=pltpu.CompilerParams(
            dimension_semantics=("parallel",),
            vmem_limit_bytes=vmem_limit),
        cost_estimate=cost,
    )(*operands)
    return out[:NT] if NT_pad != NT else out


# ---------------------------------------------------------------------------
# Full TCN_GCN_unit forward
# ---------------------------------------------------------------------------
def tcn_gcn_unit_forward_flat(x_flat, folded, *, tile_nt=1024):
    """Channels-last entry point: x_flat (N*T, V*C) -> (N*T, V*C).
    Use this between stacked units to avoid NCHW relayouts."""
    return fused_block(x_flat, folded, tile_nt=tile_nt)


def tcn_gcn_unit_forward(x0, folded, *, tile_nt=1024):
    # x0: (N, C_in, T, V) float32, NCHW like PyTorch.
    N, C, T, V = x0.shape
    # Single NCHW -> channels-last relayout; the same slab serves as GCN input,
    # GCN residual and unit residual inside the fused kernel (in==out, stride=1).
    x_flat = jnp.transpose(x0, (0, 2, 3, 1)).reshape(N * T, V * C)
    # TODO(synk): the learnable bilinear temporal Shift (cuda Shift op) is
    # identity at zero-initialized shift offsets with stride=1; only that
    # (identity) case is implemented here.
    out = tcn_gcn_unit_forward_flat(x_flat, folded, tile_nt=tile_nt)
    return jnp.transpose(out.reshape(N, T, V, folded['C']), (0, 3, 1, 2))


# ---------------------------------------------------------------------------
# Pure-JAX reference (mirrors the PyTorch forward, inference-mode BN)
# ---------------------------------------------------------------------------
def reference_forward(x0, p):
    N, C, T, V = x0.shape
    Cout = p['Linear_weight'].shape[1]
    x = jnp.transpose(x0, (0, 2, 3, 1)).reshape(N * T, V * C)
    x = jnp.take(x, p['shift_in'], axis=1).reshape(N * T, V, C)
    x = x * (jnp.tanh(p['Feature_Mask']) + 1.0)
    x = jnp.einsum('nwc,cd->nwd', x, p['Linear_weight'],
                   precision=HIGHEST) + p['Linear_bias']
    x = x.reshape(N * T, -1)
    x = jnp.take(x, p['shift_out'], axis=1)
    x = x * p['gcn_bn_scale'] + p['gcn_bn_shift']
    x = x.reshape(N, T, V, Cout).transpose(0, 3, 1, 2)
    x = jnp.maximum(x + x0, 0.0)                      # gcn residual + relu
    y = x * p['tcn_bn1_scale'][None, :, None, None] + p['tcn_bn1_shift'][None, :, None, None]
    y = jnp.einsum('nctv,cd->ndtv', y, p['tcn_weight'],
                   precision=HIGHEST) + p['tcn_bias'][None, :, None, None]
    y = jnp.maximum(y, 0.0)
    y = y * p['tcn_bn2_scale'][None, :, None, None] + p['tcn_bn2_shift'][None, :, None, None]
    return jnp.maximum(y + x0, 0.0)                   # unit residual + relu


# ---------------------------------------------------------------------------
# Parameter construction (deterministic)
# ---------------------------------------------------------------------------
def make_params(key, C_in, C_out, V, weight=2):
    ks = jax.random.split(key, 16)

    # chain-graph adjacency, shape (1, V, V) like the A the model receives
    A3 = np.zeros((1, V, V), dtype=np.float32)
    for i in range(V - 1):
        A3[0, i, i + 1] = 1.0
        A3[0, i + 1, i] = 1.0
    A = np.sum(A3, 0)
    A[A == 0] = 0
    A[A != 0] = 1

    shift_in = modified_shift_index(A, V, C_in, weight)
    shift_out = modified_shift_index(A, V, C_out, weight)

    def bn_affine(kg, kb, km, kv, n):
        gamma = 1.0 + 0.1 * jax.random.normal(kg, (n,), jnp.float32)
        beta = 0.1 * jax.random.normal(kb, (n,), jnp.float32)
        mean = 0.1 * jax.random.normal(km, (n,), jnp.float32)
        var = 1.0 + 0.1 * jax.random.uniform(kv, (n,), jnp.float32)
        scale = gamma / jnp.sqrt(var + 1e-5)
        shift = beta - mean * scale
        return scale, shift

    gcn_bn_scale, gcn_bn_shift = bn_affine(ks[0], ks[1], ks[2], ks[3], V * C_out)
    tcn_bn1_scale, tcn_bn1_shift = bn_affine(ks[4], ks[5], ks[6], ks[7], C_out)
    tcn_bn2_scale, tcn_bn2_shift = bn_affine(ks[8], ks[9], ks[10], ks[11], C_out)

    params = dict(
        shift_in=jnp.asarray(shift_in),
        shift_out=jnp.asarray(shift_out),
        Linear_weight=math.sqrt(1.0 / C_out)
        * jax.random.normal(ks[12], (C_in, C_out), jnp.float32),
        Linear_bias=0.01 * jax.random.normal(ks[13], (1, 1, C_out), jnp.float32),
        Feature_Mask=0.1 * jax.random.normal(ks[14], (1, V, C_in), jnp.float32),
        gcn_bn_scale=gcn_bn_scale, gcn_bn_shift=gcn_bn_shift,
        # Shift_tcn.temporal_linear: Conv2d(C,C,1) -> stored channels-last (Cin, Cout)
        tcn_weight=math.sqrt(2.0 / C_out)
        * jax.random.normal(ks[15], (C_out, C_out), jnp.float32),
        tcn_bias=0.01 * jnp.arange(C_out, dtype=jnp.float32) / C_out,
        tcn_bn1_scale=tcn_bn1_scale, tcn_bn1_shift=tcn_bn1_shift,
        tcn_bn2_scale=tcn_bn2_scale, tcn_bn2_shift=tcn_bn2_shift,
    )
    return params


# ---------------------------------------------------------------------------
if __name__ == "__main__":
    N, C, T, V = 2, 16, 8, 16      # in_channels == out_channels, stride=1
    key = jax.random.PRNGKey(0)
    kx, kp, kx2 = jax.random.split(key, 3)

    params = make_params(kp, C, C, V, weight=2)
    folded = fold_unit_params(params, V, C, C)      # one-time offline folding

    fwd = jax.jit(lambda x: tcn_gcn_unit_forward(x, folded))
    ref = jax.jit(lambda x: reference_forward(x, params))

    # Kernel matmuls run in single-pass bf16 (per perf review); the reference is
    # f32 HIGHEST, so tolerances are loosened accordingly.
    x0 = jax.random.normal(kx, (N, C, T, V), jnp.float32)
    out = jax.block_until_ready(fwd(x0))
    expected = jax.block_until_ready(ref(x0))
    assert out.shape == (N, C, T, V)
    np.testing.assert_allclose(np.asarray(out), np.asarray(expected),
                               rtol=5e-2, atol=5e-2)

    # ragged N*T (exercises the remainder-padding path of the fused kernel)
    x1 = jax.random.normal(kx2, (1, C, 5, V), jnp.float32)
    out1 = jax.block_until_ready(jax.jit(lambda x: tcn_gcn_unit_forward(x, folded))(x1))
    exp1 = jax.block_until_ready(jax.jit(lambda x: reference_forward(x, params))(x1))
    np.testing.assert_allclose(np.asarray(out1), np.asarray(exp1),
                               rtol=5e-2, atol=5e-2)

    print("KERNEL_OK")
</pallas_src>

<mosaic_0001>
module attributes {stable_mosaic.version = 11 : i64} {
  func.func @kernel(%arg0: i32, %arg1: memref<8x256xf32, #tpu.memory_space<vmem>>, %arg2: memref<256x256xbf16, #tpu.memory_space<vmem>>, %arg3: memref<1x256xf32, #tpu.memory_space<vmem>>, %arg4: memref<256x256xbf16, #tpu.memory_space<vmem>>, %arg5: memref<1x256xf32, #tpu.memory_space<vmem>>, %arg6: memref<1x256xf32, #tpu.memory_space<vmem>>, %arg7: memref<8x256xf32, #tpu.memory_space<vmem>>) attributes {dimension_semantics = [#tpu.dimension_semantics<parallel>], iteration_bounds = array<i64: 2>, scalar_prefetch = 0 : i64, scratch_operands = 0 : i64, tpu.core_type = #tpu.core_type<tc>, window_params = [{transform_indices = @transform_0, window_bounds = array<i64: 8, 256>}, {pipeline_mode = #tpu.pipeline_mode<synchronous>, transform_indices = @transform_1, window_bounds = array<i64: 256, 256>}, {pipeline_mode = #tpu.pipeline_mode<synchronous>, transform_indices = @transform_2, window_bounds = array<i64: 1, 256>}, {pipeline_mode = #tpu.pipeline_mode<synchronous>, transform_indices = @transform_3, window_bounds = array<i64: 256, 256>}, {pipeline_mode = #tpu.pipeline_mode<synchronous>, transform_indices = @transform_4, window_bounds = array<i64: 1, 256>}, {pipeline_mode = #tpu.pipeline_mode<synchronous>, transform_indices = @transform_5, window_bounds = array<i64: 1, 256>}, {transform_indices = @transform_6, window_bounds = array<i64: 8, 256>}]} {
    %c0 = arith.constant 0 : index
    %c0_0 = arith.constant 0 : index
    %0 = vector.load %arg1[%c0, %c0_0] : memref<8x256xf32, #tpu.memory_space<vmem>>, vector<8x256xf32>
    %1 = arith.truncf %0 : vector<8x256xf32> to vector<8x256xbf16>
    %c0_1 = arith.constant 0 : index
    %c0_2 = arith.constant 0 : index
    %2 = vector.load %arg2[%c0_1, %c0_2] : memref<256x256xbf16, #tpu.memory_space<vmem>>, vector<256x256xbf16>
    %cst = arith.constant dense<0.000000e+00> : vector<8x256xf32>
    %3 = tpu.matmul %1, %2, %cst {dimension_numbers = #tpu.dot_dimension_numbers<[1], [0], [0], [1], [0, 0, 1, 1], [], []>} : vector<8x256xbf16>, vector<256x256xbf16>, vector<8x256xf32> -> vector<8x256xf32>
    %c0_3 = arith.constant 0 : index
    %c0_4 = arith.constant 0 : index
    %4 = vector.load %arg3[%c0_3, %c0_4] : memref<1x256xf32, #tpu.memory_space<vmem>>, vector<1x256xf32>
    %5 = vector.broadcast %4 : vector<1x256xf32> to vector<8x256xf32>
    %6 = arith.addf %3, %5 : vector<8x256xf32>
    %7 = arith.addf %6, %0 : vector<8x256xf32>
    %cst_5 = arith.constant 0.000000e+00 : f32
    %8 = vector.broadcast %cst_5 : f32 to vector<8x256xf32>
    %9 = arith.maximumf %7, %8 : vector<8x256xf32>
    %10 = arith.truncf %9 : vector<8x256xf32> to vector<8x256xbf16>
    %c0_6 = arith.constant 0 : index
    %c0_7 = arith.constant 0 : index
    %11 = vector.load %arg4[%c0_6, %c0_7] : memref<256x256xbf16, #tpu.memory_space<vmem>>, vector<256x256xbf16>
    %cst_8 = arith.constant dense<0.000000e+00> : vector<8x256xf32>
    %12 = tpu.matmul %10, %11, %cst_8 {dimension_numbers = #tpu.dot_dimension_numbers<[1], [0], [0], [1], [0, 0, 1, 1], [], []>} : vector<8x256xbf16>, vector<256x256xbf16>, vector<8x256xf32> -> vector<8x256xf32>
    %c0_9 = arith.constant 0 : index
    %c0_10 = arith.constant 0 : index
    %13 = vector.load %arg5[%c0_9, %c0_10] : memref<1x256xf32, #tpu.memory_space<vmem>>, vector<1x256xf32>
    %14 = vector.broadcast %13 : vector<1x256xf32> to vector<8x256xf32>
    %15 = arith.addf %12, %14 : vector<8x256xf32>
    %cst_11 = arith.constant 0.000000e+00 : f32
    %16 = vector.broadcast %cst_11 : f32 to vector<8x256xf32>
    %17 = arith.maximumf %15, %16 : vector<8x256xf32>
    %c0_12 = arith.constant 0 : index
    %c0_13 = arith.constant 0 : index
    %18 = vector.load %arg6[%c0_12, %c0_13] : memref<1x256xf32, #tpu.memory_space<vmem>>, vector<1x256xf32>
    %19 = vector.broadcast %18 : vector<1x256xf32> to vector<8x256xf32>
    %20 = arith.addf %17, %19 : vector<8x256xf32>
    %21 = arith.addf %20, %0 : vector<8x256xf32>
    %cst_14 = arith.constant 0.000000e+00 : f32
    %22 = vector.broadcast %cst_14 : f32 to vector<8x256xf32>
    %23 = arith.maximumf %21, %22 : vector<8x256xf32>
    %c0_15 = arith.constant 0 : index
    %c0_16 = arith.constant 0 : index
    %24 = vector.load %arg7[%c0_15, %c0_16] : memref<8x256xf32, #tpu.memory_space<vmem>>, vector<8x256xf32>
    tpu.vector_store %arg7[%c0_15, %c0_16], %23 {strides = array<i32>} : memref<8x256xf32, #tpu.memory_space<vmem>>, vector<8x256xf32>,
    return
  }
  func.func @transform_0(%arg0: i32) -> (i32, i32) {
    %c0_i32 = arith.constant 0 : i32
    %c0_i32_0 = arith.constant 0 : i32
    return %arg0, %c0_i32 : i32, i32
  }
  func.func @transform_1(%arg0: i32) -> (i32, i32) {
    %c0_i32 = arith.constant 0 : i32
    %c0_i32_0 = arith.constant 0 : i32
    %c0_i32_1 = arith.constant 0 : i32
    return %c0_i32, %c0_i32_0 : i32, i32
  }
  func.func @transform_2(%arg0: i32) -> (i32, i32) {
    %c0_i32 = arith.constant 0 : i32
    %c0_i32_0 = arith.constant 0 : i32
    %c0_i32_1 = arith.constant 0 : i32
    return %c0_i32, %c0_i32_0 : i32, i32
  }
  func.func @transform_3(%arg0: i32) -> (i32, i32) {
    %c0_i32 = arith.constant 0 : i32
    %c0_i32_0 = arith.constant 0 : i32
    %c0_i32_1 = arith.constant 0 : i32
    return %c0_i32, %c0_i32_0 : i32, i32
  }
  func.func @transform_4(%arg0: i32) -> (i32, i32) {
    %c0_i32 = arith.constant 0 : i32
    %c0_i32_0 = arith.constant 0 : i32
    %c0_i32_1 = arith.constant 0 : i32
    return %c0_i32, %c0_i32_0 : i32, i32
  }
  func.func @transform_5(%arg0: i32) -> (i32, i32) {
    %c0_i32 = arith.constant 0 : i32
    %c0_i32_0 = arith.constant 0 : i32
    %c0_i32_1 = arith.constant 0 : i32
    return %c0_i32, %c0_i32_0 : i32, i32
  }
  func.func @transform_6(%arg0: i32) -> (i32, i32) {
    %c0_i32 = arith.constant 0 : i32
    %c0_i32_0 = arith.constant 0 : i32
    return %arg0, %c0_i32 : i32, i32
  }
}

</mosaic_0001>

<llo_original>
// kernel: _lambda_.1
$region0: #{_lambda_.1}
  #allocation0 [shape = 'u32[]', space=smem, size = 0x4, offset = 0x4, fixed_abs, tag = 'smem constant byte address 0x4 - core index']
  #allocation1 [shape = 'u32[72,128]{1,0:T(1,128)}', space=vmem, size = 0x9000, scoped, tag = 'internal scratch']
  %s0 = inlined_call_operand.vmem [shape: f32[16,256], index: 0, kind: input, shape index: {}]
  %s1 = inlined_call_operand.vmem [shape: bf16[256,256], index: 1, kind: input, shape index: {}]
  %s2 = inlined_call_operand.vmem [shape: f32[1,256], index: 2, kind: input, shape index: {}]
  %s3 = inlined_call_operand.vmem [shape: bf16[256,256], index: 3, kind: input, shape index: {}]
  %s4 = inlined_call_operand.vmem [shape: f32[1,256], index: 4, kind: input, shape index: {}]
  %s5 = inlined_call_operand.vmem [shape: f32[1,256], index: 5, kind: input, shape index: {}]
  %s6 = inlined_call_operand.vmem [shape: f32[16,256], index: 6, kind: output, shape index: {}]
  %s7 = sld [smem:[#allocation0]]
  $region57: #{_lambda_.1} parent=0
    _
  %s9 = ssub.s32 1, %s7
  %s10 = scalar_select 0, %s9, %s7
  loop: start=0, step=1, limit=4
  $region2: #{_lambda_.1} parent=0 // loop_pre_header
    _
  $region3: #{_lambda_.1} parent=0 // loop_header
    %s12 = sphi 0, %s16
    %p13 = scmp.ge.s32.totalorder %s12, 4
    %s22 = sphi 0, %s24
    %s25 = sphi 0, %s22
    %s26 = sphi 0, %s25
    %s42 = sphi 0, %s26
    %s46 = sphi 0, %s46
    %s48 = sphi 0, %s46
    %s49 = sphi 0, %s48
    %s63 = sphi 0, %s49
    %s67 = sphi 0, %s67
    %s69 = sphi 0, %s67
    %s70 = sphi 0, %s69
    %s84 = sphi 0, %s70
    %s88 = sphi 0, %s88
    %s90 = sphi 0, %s88
    %s91 = sphi 0, %s90
    %s105 = sphi 0, %s91
    %s109 = sphi 0, %s109
    %s111 = sphi 0, %s109
    %s112 = sphi 0, %s111
    %s126 = sphi 0, %s112
    %s130 = sphi 0, %s130
    %s132 = sphi 0, %s130
    %s133 = sphi 0, %s132
    %s147 = sphi 0, %s133
    %s153 = sphi 0, %s155
    %s156 = sphi 0, %s153
    %s157 = sphi 0, %s156
    %s173 = sphi 0, %s157
  $region4: #{_lambda_.1} parent=0 // loop_header_branch
    %15 = sbr.rel (%p13) target = $region8
  $region5: #{_lambda_.1} parent=0 // loop_body
    %s17 = ssub.s32 %s12, 1
    %s18 = ssub.s32 %s12, 2
    %s19 = sadd.s32 %s12, 1
    %s20 = ssub.s32 %s12, %s19
    %p21 = scmp.eq.s32.totalorder %s20, 0
    %s23 = sadd.s32 %s22, 1
    %s24 = scalar_select %p21, %s22, %s23
    %p27 = pneg %p21
    %p28 = scmp.eq.s32.totalorder %s12, 1
    %p29 = por %p27, %p28
    %p30 = scmp.ne.s32.totalorder %s22, %s25
    %p31 = scmp.eq.s32.totalorder %s12, 0
    %p32 = por %p30, %p31
    %p33 = scmp.ne.s32.totalorder %s22, %s25
    %p34 = scmp.eq.s32.totalorder %s17, 1
    %p35 = por %p33, %p34
    %p36 = scmp.ne.s32.totalorder %s25, %s26
    %p37 = scmp.eq.s32.totalorder %s17, 0
    %p38 = por %p36, %p37
    %p39 = scmp.ne.s32.totalorder %s25, %s26
    %p40 = scmp.eq.s32.totalorder %s18, 1
    %p41 = por %p39, %p40
    %p43 = scmp.ne.s32.totalorder %s26, %s42
    %p44 = scmp.eq.s32.totalorder %s18, 0
    %p45 = por %p43, %p44
    %s47 = sadd.s32 %s46, 1
    %p50 = scmp.eq.s32.totalorder %s12, 1
    %p51 = scmp.ne.s32.totalorder %s46, %s48
    %p52 = scmp.eq.s32.totalorder %s12, 0
    %p53 = por %p51, %p52
    %p54 = scmp.ne.s32.totalorder %s46, %s48
    %p55 = scmp.eq.s32.totalorder %s17, 1
    %p56 = por %p54, %p55
    %p57 = scmp.ne.s32.totalorder %s48, %s49
    %p58 = scmp.eq.s32.totalorder %s17, 0
    %p59 = por %p57, %p58
    %p60 = scmp.ne.s32.totalorder %s48, %s49
    %p61 = scmp.eq.s32.totalorder %s18, 1
    %p62 = por %p60, %p61
    %p64 = scmp.ne.s32.totalorder %s49, %s63
    %p65 = scmp.eq.s32.totalorder %s18, 0
    %p66 = por %p64, %p65
    %s68 = sadd.s32 %s67, 1
    %p71 = scmp.eq.s32.totalorder %s12, 1
    %p72 = scmp.ne.s32.totalorder %s67, %s69
    %p73 = scmp.eq.s32.totalorder %s12, 0
    %p74 = por %p72, %p73
    %p75 = scmp.ne.s32.totalorder %s67, %s69
    %p76 = scmp.eq.s32.totalorder %s17, 1
    %p77 = por %p75, %p76
    %p78 = scmp.ne.s32.totalorder %s69, %s70
    %p79 = scmp.eq.s32.totalorder %s17, 0
    %p80 = por %p78, %p79
    %p81 = scmp.ne.s32.totalorder %s69, %s70
    %p82 = scmp.eq.s32.totalorder %s18, 1
    %p83 = por %p81, %p82
    %p85 = scmp.ne.s32.totalorder %s70, %s84
    %p86 = scmp.eq.s32.totalorder %s18, 0
    %p87 = por %p85, %p86
    %s89 = sadd.s32 %s88, 1
    %p92 = scmp.eq.s32.totalorder %s12, 1
    %p93 = scmp.ne.s32.totalorder %s88, %s90
    %p94 = scmp.eq.s32.totalorder %s12, 0
    %p95 = por %p93, %p94
    %p96 = scmp.ne.s32.totalorder %s88, %s90
    %p97 = scmp.eq.s32.totalorder %s17, 1
    %p98 = por %p96, %p97
    %p99 = scmp.ne.s32.totalorder %s90, %s91
    %p100 = scmp.eq.s32.totalorder %s17, 0
    %p101 = por %p99, %p100
    %p102 = scmp.ne.s32.totalorder %s90, %s91
    %p103 = scmp.eq.s32.totalorder %s18, 1
    %p104 = por %p102, %p103
    %p106 = scmp.ne.s32.totalorder %s91, %s105
    %p107 = scmp.eq.s32.totalorder %s18, 0
    %p108 = por %p106, %p107
    %s110 = sadd.s32 %s109, 1
    %p113 = scmp.eq.s32.totalorder %s12, 1
    %p114 = scmp.ne.s32.totalorder %s109, %s111
    %p115 = scmp.eq.s32.totalorder %s12, 0
    %p116 = por %p114, %p115
    %p117 = scmp.ne.s32.totalorder %s109, %s111
    %p118 = scmp.eq.s32.totalorder %s17, 1
    %p119 = por %p117, %p118
    %p120 = scmp.ne.s32.totalorder %s111, %s112
    %p121 = scmp.eq.s32.totalorder %s17, 0
    %p122 = por %p120, %p121
    %p123 = scmp.ne.s32.totalorder %s111, %s112
    %p124 = scmp.eq.s32.totalorder %s18, 1
    %p125 = por %p123, %p124
    %p127 = scmp.ne.s32.totalorder %s112, %s126
    %p128 = scmp.eq.s32.totalorder %s18, 0
    %p129 = por %p127, %p128
    %s131 = sadd.s32 %s130, 1
    %p134 = scmp.eq.s32.totalorder %s12, 1
    %p135 = scmp.ne.s32.totalorder %s130, %s132
    %p136 = scmp.eq.s32.totalorder %s12, 0
    %p137 = por %p135, %p136
    %p138 = scmp.ne.s32.totalorder %s130, %s132
    %p139 = scmp.eq.s32.totalorder %s17, 1
    %p140 = por %p138, %p139
    %p141 = scmp.ne.s32.totalorder %s132, %s133
    %p142 = scmp.eq.s32.totalorder %s17, 0
    %p143 = por %p141, %p142
    %p144 = scmp.ne.s32.totalorder %s132, %s133
    %p145 = scmp.eq.s32.totalorder %s18, 1
    %p146 = por %p144, %p145
    %p148 = scmp.ne.s32.totalorder %s133, %s147
    %p149 = scmp.eq.s32.totalorder %s18, 0
    %p150 = por %p148, %p149
    %s151 = ssub.s32 %s12, %s19
    %p152 = scmp.eq.s32.totalorder %s151, 0
    %s154 = sadd.s32 %s153, 1
    %s155 = scalar_select %p152, %s153, %s154
    %p158 = pneg %p152
    %p159 = scmp.eq.s32.totalorder %s12, 1
    %p160 = por %p158, %p159
    %p161 = scmp.ne.s32.totalorder %s153, %s156
    %p162 = scmp.eq.s32.totalorder %s12, 0
    %p163 = por %p161, %p162
    %p164 = scmp.ne.s32.totalorder %s153, %s156
    %p165 = scmp.eq.s32.totalorder %s17, 1
    %p166 = por %p164, %p165
    %p167 = scmp.ne.s32.totalorder %s156, %s157
    %p168 = scmp.eq.s32.totalorder %s17, 0
    %p169 = por %p167, %p168
    %p170 = scmp.ne.s32.totalorder %s156, %s157
    %p171 = scmp.eq.s32.totalorder %s18, 1
    %p172 = por %p170, %p171
    %p174 = scmp.ne.s32.totalorder %s157, %s173
    %p175 = scmp.eq.s32.totalorder %s18, 0
    %p176 = por %p174, %p175
    %p177 = scmp.le.s32.totalorder 1, %s12
    %p178 = scmp.lt.s32.totalorder %s12, 3
    %p179 = pnand %p177, %p178
    %p180 = pneg %p179
    // Predicated region
    $region9: #{_lambda_.1} parent=5 // pred_check
      _
    $region10: #{_lambda_.1} parent=5 // pred_check_branch
      %182 = sbr.rel (%p179) target = $region12
    $region11: #{_lambda_.1} parent=5 // pred_region
      %s183 = ssub.s32 %s12, 1
      // Predicated region
      $region13: #{_lambda_.1} parent=11 // pred_check
        %p184 = pneg %p59
      $region14: #{_lambda_.1} parent=11 // pred_check_branch
        %186 = sbr.rel (%p184) target = $region16
      $region15: #{_lambda_.1} parent=11 // pred_region
        _
      $region16: #{_lambda_.1} parent=11 // pred_fallthru
        _
      // Predicated region
      $region17: #{_lambda_.1} parent=11 // pred_check
        %p187 = pneg %p80
      $region18: #{_lambda_.1} parent=11 // pred_check_branch
        %189 = sbr.rel (%p187) target = $region20
      $region19: #{_lambda_.1} parent=11 // pred_region
        _
      $region20: #{_lambda_.1} parent=11 // pred_fallthru
        _
      // Predicated region
      $region21: #{_lambda_.1} parent=11 // pred_check
        %p190 = pneg %p101
      $region22: #{_lambda_.1} parent=11 // pred_check_branch
        %192 = sbr.rel (%p190) target = $region24
      $region23: #{_lambda_.1} parent=11 // pred_region
        _
      $region24: #{_lambda_.1} parent=11 // pred_fallthru
        _
      // Predicated region
      $region25: #{_lambda_.1} parent=11 // pred_check
        %p193 = pneg %p122
      $region26: #{_lambda_.1} parent=11 // pred_check_branch
        %195 = sbr.rel (%p193) target = $region28
      $region27: #{_lambda_.1} parent=11 // pred_region
        _
      $region28: #{_lambda_.1} parent=11 // pred_fallthru
        _
      // Predicated region
      $region29: #{_lambda_.1} parent=11 // pred_check
        %p196 = pneg %p143
      $region30: #{_lambda_.1} parent=11 // pred_check_branch
        %198 = sbr.rel (%p196) target = $region32
      $region31: #{_lambda_.1} parent=11 // pred_region
        _
      $region32: #{_lambda_.1} parent=11 // pred_fallthru
        _
    $region12: #{_lambda_.1} parent=5 // pred_fallthru
      _
    %p199 = scmp.lt.s32.totalorder %s12, 2
    // Predicated region
    $region33: #{_lambda_.1} parent=5 // pred_check
      %p200 = pneg %p199
    $region34: #{_lambda_.1} parent=5 // pred_check_branch
      %202 = sbr.rel (%p200) target = $region36
    $region35: #{_lambda_.1} parent=5 // pred_region
      // Predicated region
      $region37: #{_lambda_.1} parent=35 // pred_check
        %p203 = pneg %p32
      $region38: #{_lambda_.1} parent=35 // pred_check_branch
        %205 = sbr.rel (%p203) target = $region40
      $region39: #{_lambda_.1} parent=35 // pred_region
        %p206 = scmp.lt.s32.totalorder %s12, 1
        %s207 = scalar_select %p206, %s12, 1
        %s208 = smul.addr %s207, 2
        %s209 = smul.addr %s208, 8
        %s210 = scalar_lea.vmem %s0, %s209
      $region40: #{_lambda_.1} parent=35 // pred_fallthru
        _
    $region36: #{_lambda_.1} parent=5 // pred_fallthru
      _
    %p211 = scmp.le.s32.totalorder 1, %s12
    %p212 = scmp.lt.s32.totalorder %s12, 3
    %p213 = pnand %p211, %p212
    %p214 = pneg %p213
    // Predicated region
    $region41: #{_lambda_.1} parent=5 // pred_check
      _
    $region42: #{_lambda_.1} parent=5 // pred_check_branch
      %216 = sbr.rel (%p213) target = $region44
    $region43: #{_lambda_.1} parent=5 // pred_region
      %s217 = ssub.s32 %s12, 1
      %p218 = scmp.lt.s32.totalorder %s17, 1
      %s219 = scalar_select %p218, %s17, 1
      %s220 = smul.addr %s219, 2
      %s221 = smul.addr %s220, 8
      %s222 = scalar_lea.vmem %s0, %s221
      %p223 = pneg %p38
      %p224 = pneg %p35
      %p225 = pneg %p59
      %p226 = pneg %p56
      %p227 = pneg %p80
      %p228 = pneg %p77
      %p229 = pneg %p101
      %p230 = pneg %p98
      %p231 = pneg %p122
      %p232 = pneg %p119
      %p233 = pneg %p143
      %p234 = pneg %p140
      %p235 = pneg %p169
      %p236 = pneg %p166
      %p237 = scmp.lt.s32.totalorder %s17, 1
      %s238 = scalar_select %p237, %s17, 1
      %s239 = smul.addr %s238, 2
      %s240 = smul.addr %s239, 8
      %s241 = scalar_lea.vmem %s6, %s240
      %p242 = scmp.lt.s32.totalorder %s17, 1
      %s243 = scalar_select %p242, %s17, 1
      %s244 = smul.addr %s243, 2
      %s245 = smul.addr %s244, 8
      %s246 = scalar_lea.vmem %s0, %s245
      %p247 = scmp.lt.s32.totalorder %s17, 1
      %s248 = scalar_select %p247, %s17, 1
      %s249 = smul.addr %s248, 2
      %s250 = smul.addr %s249, 8
      %s251 = scalar_lea.vmem %s6, %s250
      %v252 = vld [vmem:[%s246] sm:$0xff]
      %v253 = vld [vmem:[%s246 + $0x8] sm:$0xff]
      %v254 = vpack.c.bf16 %v252, %v252
      %v255 = vpack.c.bf16 %v253, %v253
      %v256 = vld [vmem:[%s1] sm:$0xff]
      %v257 = vld [vmem:[%s1 + $0x8] sm:$0xff]
      %v258 = vld [vmem:[%s1 + $0x10] sm:$0xff]
      %v259 = vld [vmem:[%s1 + $0x18] sm:$0xff]
      %v260 = vld [vmem:[%s1 + $0x20] sm:$0xff]
      %v261 = vld [vmem:[%s1 + $0x28] sm:$0xff]
      %v262 = vld [vmem:[%s1 + $0x30] sm:$0xff]
      %v263 = vld [vmem:[%s1 + $0x38] sm:$0xff]
      %v264 = vld [vmem:[%s1 + $0x40] sm:$0xff]
      %v265 = vld [vmem:[%s1 + $0x48] sm:$0xff]
      %v266 = vld [vmem:[%s1 + $0x50] sm:$0xff]
      %v267 = vld [vmem:[%s1 + $0x58] sm:$0xff]
      %v268 = vld [vmem:[%s1 + $0x60] sm:$0xff]
      %v269 = vld [vmem:[%s1 + $0x68] sm:$0xff]
      %v270 = vld [vmem:[%s1 + $0x70] sm:$0xff]
      %v271 = vld [vmem:[%s1 + $0x78] sm:$0xff]
      %v272 = vld [vmem:[%s1 + $0x80] sm:$0xff]
      %v273 = vld [vmem:[%s1 + $0x88] sm:$0xff]
      %v274 = vld [vmem:[%s1 + $0x90] sm:$0xff]
      %v275 = vld [vmem:[%s1 + $0x98] sm:$0xff]
      %v276 = vld [vmem:[%s1 + $0xa0] sm:$0xff]
      %v277 = vld [vmem:[%s1 + $0xa8] sm:$0xff]
      %v278 = vld [vmem:[%s1 + $0xb0] sm:$0xff]
      %v279 = vld [vmem:[%s1 + $0xb8] sm:$0xff]
      %v280 = vld [vmem:[%s1 + $0xc0] sm:$0xff]
      %v281 = vld [vmem:[%s1 + $0xc8] sm:$0xff]
      %v282 = vld [vmem:[%s1 + $0xd0] sm:$0xff]
      %v283 = vld [vmem:[%s1 + $0xd8] sm:$0xff]
      %v284 = vld [vmem:[%s1 + $0xe0] sm:$0xff]
      %v285 = vld [vmem:[%s1 + $0xe8] sm:$0xff]
      %v286 = vld [vmem:[%s1 + $0xf0] sm:$0xff]
      %v287 = vld [vmem:[%s1 + $0xf8] sm:$0xff]
      %v288 = vld [vmem:[%s2] sm:$0x3]
      %v290 = vperm.slane %v288, 0
      %v291 = vperm.slane %v288, 1
      %v326 = vunpack.c.l.b16 %v256
      %v327 = vunpack.c.h.b16 %v256
      %v328 = vunpack.c.l.b16 %v257
      %v329 = vunpack.c.h.b16 %v257
      %v330 = vunpack.c.l.b16 %v258
      %v331 = vunpack.c.h.b16 %v258
      %v332 = vunpack.c.l.b16 %v259
      %v333 = vunpack.c.h.b16 %v259
      %v334 = vunpack.c.l.b16 %v260
      %v335 = vunpack.c.h.b16 %v260
      %v336 = vunpack.c.l.b16 %v261
      %v337 = vunpack.c.h.b16 %v261
      %v338 = vunpack.c.l.b16 %v262
      %v339 = vunpack.c.h.b16 %v262
      %v340 = vunpack.c.l.b16 %v263
      %v341 = vunpack.c.h.b16 %v263
      %v342 = vunpack.c.l.b16 %v264
      %v343 = vunpack.c.h.b16 %v264
      %v344 = vunpack.c.l.b16 %v265
      %v345 = vunpack.c.h.b16 %v265
      %v346 = vunpack.c.l.b16 %v266
      %v347 = vunpack.c.h.b16 %v266
      %v348 = vunpack.c.l.b16 %v267
      %v349 = vunpack.c.h.b16 %v267
      %v350 = vunpack.c.l.b16 %v268
      %v351 = vunpack.c.h.b16 %v268
      %v352 = vunpack.c.l.b16 %v269
      %v353 = vunpack.c.h.b16 %v269
      %v354 = vunpack.c.l.b16 %v270
      %v355 = vunpack.c.h.b16 %v270
      %v356 = vunpack.c.l.b16 %v271
      %v357 = vunpack.c.h.b16 %v271
      %v358 = vunpack.c.l.b16 %v272
      %v359 = vunpack.c.h.b16 %v272
      %v360 = vunpack.c.l.b16 %v273
      %v361 = vunpack.c.h.b16 %v273
      %v362 = vunpack.c.l.b16 %v274
      %v363 = vunpack.c.h.b16 %v274
      %v364 = vunpack.c.l.b16 %v275
      %v365 = vunpack.c.h.b16 %v275
      %v366 = vunpack.c.l.b16 %v276
      %v367 = vunpack.c.h.b16 %v276
      %v368 = vunpack.c.l.b16 %v277
      %v369 = vunpack.c.h.b16 %v277
      %v370 = vunpack.c.l.b16 %v278
      %v371 = vunpack.c.h.b16 %v278
      %v372 = vunpack.c.l.b16 %v279
      %v373 = vunpack.c.h.b16 %v279
      %v374 = vunpack.c.l.b16 %v280
      %v375 = vunpack.c.h.b16 %v280
      %v376 = vunpack.c.l.b16 %v281
      %v377 = vunpack.c.h.b16 %v281
      %v378 = vunpack.c.l.b16 %v282
      %v379 = vunpack.c.h.b16 %v282
      %v380 = vunpack.c.l.b16 %v283
      %v381 = vunpack.c.h.b16 %v283
      %v382 = vunpack.c.l.b16 %v284
      %v383 = vunpack.c.h.b16 %v284
      %v384 = vunpack.c.l.b16 %v285
      %v385 = vunpack.c.h.b16 %v285
      %v386 = vunpack.c.l.b16 %v286
      %v387 = vunpack.c.h.b16 %v286
      %v388 = vunpack.c.l.b16 %v287
      %v389 = vunpack.c.h.b16 %v287
      %v390 = vpack.c.b16 %v328, %v326
      %v391 = vpack.c.b16 %v329, %v327
      %v392 = vpack.c.b16 %v332, %v330
      %v393 = vpack.c.b16 %v333, %v331
      %v394 = vpack.c.b16 %v336, %v334
      %v395 = vpack.c.b16 %v337, %v335
      %v396 = vpack.c.b16 %v340, %v338
      %v397 = vpack.c.b16 %v341, %v339
      %v398 = vpack.c.b16 %v344, %v342
      %v399 = vpack.c.b16 %v345, %v343
      %v400 = vpack.c.b16 %v348, %v346
      %v401 = vpack.c.b16 %v349, %v347
      %v402 = vpack.c.b16 %v352, %v350
      %v403 = vpack.c.b16 %v353, %v351
      %v404 = vpack.c.b16 %v356, %v354
      %v405 = vpack.c.b16 %v357, %v355
      %v406 = vpack.c.b16 %v360, %v358
      %v407 = vpack.c.b16 %v361, %v359
      %v408 = vpack.c.b16 %v364, %v362
      %v409 = vpack.c.b16 %v365, %v363
      %v410 = vpack.c.b16 %v368, %v366
      %v411 = vpack.c.b16 %v369, %v367
      %v412 = vpack.c.b16 %v372, %v370
      %v413 = vpack.c.b16 %v373, %v371
      %v414 = vpack.c.b16 %v376, %v374
      %v415 = vpack.c.b16 %v377, %v375
      %v416 = vpack.c.b16 %v380, %v378
      %v417 = vpack.c.b16 %v381, %v379
      %v418 = vpack.c.b16 %v384, %v382
      %v419 = vpack.c.b16 %v385, %v383
      %v420 = vpack.c.b16 %v388, %v386
      %v421 = vpack.c.b16 %v389, %v387
      %454 = vmatpush.bf16.msra.mxu0 %v404
      %455 = vmatpush.bf16.msra.mxu0 %v402
      %456 = vmatpush.bf16.msra.mxu0 %v400
      %457 = vmatpush.bf16.msra.mxu0 %v398
      %458 = vmatpush.bf16.msra.mxu0 %v396
      %459 = vmatpush.bf16.msra.mxu0 %v394
      %460 = vmatpush.bf16.msra.mxu0 %v392
      %461 = vmatpush.bf16.msra.mxu0 %v390
      %462 = vmatmul.bf16.gmra.mxu0 %v254
      %v463 = vpop.f32.mrf.mxu0
      %v464 = vadd.f32 %v290, %v463
      %v465 = vpop.f32.mrf.mxu0
      %466 = vdwg.mxu0
      %467 = vmatpush.bf16.msra.mxu0 %v420
      %468 = vmatpush.bf16.msra.mxu0 %v418
      %469 = vmatpush.bf16.msra.mxu0 %v416
      %470 = vmatpush.bf16.msra.mxu0 %v414
      %471 = vmatpush.bf16.msra.mxu0 %v412
      %472 = vmatpush.bf16.msra.mxu0 %v410
      %473 = vmatpush.bf16.msra.mxu0 %v408
      %474 = vmatpush.bf16.msra.mxu0 %v406
      %475 = vmatmul.bf16.gmra.mxu0 %v255
      %v476 = vpop.f32.mrf.mxu0
      %v477 = vadd.f32 %v464, %v476
      %v478 = vpop.f32.mrf.mxu0
      %479 = vdwg.mxu0
      %480 = vmatpush.bf16.msra.mxu0 %v405
      %481 = vmatpush.bf16.msra.mxu0 %v403
      %482 = vmatpush.bf16.msra.mxu0 %v401
      %483 = vmatpush.bf16.msra.mxu0 %v399
      %484 = vmatpush.bf16.msra.mxu0 %v397
      %485 = vmatpush.bf16.msra.mxu0 %v395
      %486 = vmatpush.bf16.msra.mxu0 %v393
      %487 = vmatpush.bf16.msra.mxu0 %v391
      %488 = vmatmul.bf16.gmra.mxu0 %v254
      %v489 = vpop.f32.mrf.mxu0
      %v490 = vadd.f32 %v291, %v489
      %v491 = vpop.f32.mrf.mxu0
      %492 = vdwg.mxu0
      %493 = vmatpush.bf16.msra.mxu0 %v421
      %494 = vmatpush.bf16.msra.mxu0 %v419
      %495 = vmatpush.bf16.msra.mxu0 %v417
      %496 = vmatpush.bf16.msra.mxu0 %v415
      %497 = vmatpush.bf16.msra.mxu0 %v413
      %498 = vmatpush.bf16.msra.mxu0 %v411
      %499 = vmatpush.bf16.msra.mxu0 %v409
      %500 = vmatpush.bf16.msra.mxu0 %v407
      %501 = vmatmul.bf16.gmra.mxu0 %v255
      %v502 = vpop.f32.mrf.mxu0
      %v503 = vadd.f32 %v490, %v502
      %v504 = vpop.f32.mrf.mxu0
      %505 = vdwg.mxu0
      %v506 = vadd.f32 %v477, %v252
      %v507 = vadd.f32 %v503, %v253
      %v508 = vmax.f32 %v506, 0.0
      %v509 = vmax.f32 %v507, 0.0
      %v510 = vpack.c.bf16 %v508, %v508
      %v511 = vpack.c.bf16 %v509, %v509
      %v512 = vld [vmem:[%s3] sm:$0xff]
      %v513 = vld [vmem:[%s3 + $0x8] sm:$0xff]
      %v514 = vld [vmem:[%s3 + $0x10] sm:$0xff]
      %v515 = vld [vmem:[%s3 + $0x18] sm:$0xff]
      %v516 = vld [vmem:[%s3 + $0x20] sm:$0xff]
      %v517 = vld [vmem:[%s3 + $0x28] sm:$0xff]
      %v518 = vld [vmem:[%s3 + $0x30] sm:$0xff]
      %v519 = vld [vmem:[%s3 + $0x38] sm:$0xff]
      %v520 = vld [vmem:[%s3 + $0x40] sm:$0xff]
      %v521 = vld [vmem:[%s3 + $0x48] sm:$0xff]
      %v522 = vld [vmem:[%s3 + $0x50] sm:$0xff]
      %v523 = vld [vmem:[%s3 + $0x58] sm:$0xff]
      %v524 = vld [vmem:[%s3 + $0x60] sm:$0xff]
      %v525 = vld [vmem:[%s3 + $0x68] sm:$0xff]
      %v526 = vld [vmem:[%s3 + $0x70] sm:$0xff]
      %v527 = vld [vmem:[%s3 + $0x78] sm:$0xff]
      %v528 = vld [vmem:[%s3 + $0x80] sm:$0xff]
      %v529 = vld [vmem:[%s3 + $0x88] sm:$0xff]
      %v530 = vld [vmem:[%s3 + $0x90] sm:$0xff]
      %v531 = vld [vmem:[%s3 + $0x98] sm:$0xff]
      %v532 = vld [vmem:[%s3 + $0xa0] sm:$0xff]
      %v533 = vld [vmem:[%s3 + $0xa8] sm:$0xff]
      %v534 = vld [vmem:[%s3 + $0xb0] sm:$0xff]
      %v535 = vld [vmem:[%s3 + $0xb8] sm:$0xff]
      %v536 = vld [vmem:[%s3 + $0xc0] sm:$0xff]
      %v537 = vld [vmem:[%s3 + $0xc8] sm:$0xff]
      %v538 = vld [vmem:[%s3 + $0xd0] sm:$0xff]
      %v539 = vld [vmem:[%s3 + $0xd8] sm:$0xff]
      %v540 = vld [vmem:[%s3 + $0xe0] sm:$0xff]
      %v541 = vld [vmem:[%s3 + $0xe8] sm:$0xff]
      %v542 = vld [vmem:[%s3 + $0xf0] sm:$0xff]
      %v543 = vld [vmem:[%s3 + $0xf8] sm:$0xff]
      %v544 = vld [vmem:[%s4] sm:$0x3]
      %v546 = vperm.slane %v544, 0
      %v547 = vperm.slane %v544, 1
      %v582 = vunpack.c.l.b16 %v512
      %v583 = vunpack.c.h.b16 %v512
      %v584 = vunpack.c.l.b16 %v513
      %v585 = vunpack.c.h.b16 %v513
      %v586 = vunpack.c.l.b16 %v514
      %v587 = vunpack.c.h.b16 %v514
      %v588 = vunpack.c.l.b16 %v515
      %v589 = vunpack.c.h.b16 %v515
      %v590 = vunpack.c.l.b16 %v516
      %v591 = vunpack.c.h.b16 %v516
      %v592 = vunpack.c.l.b16 %v517
      %v593 = vunpack.c.h.b16 %v517
      %v594 = vunpack.c.l.b16 %v518
      %v595 = vunpack.c.h.b16 %v518
      %v596 = vunpack.c.l.b16 %v519
      %v597 = vunpack.c.h.b16 %v519
      %v598 = vunpack.c.l.b16 %v520
      %v599 = vunpack.c.h.b16 %v520
      %v600 = vunpack.c.l.b16 %v521
      %v601 = vunpack.c.h.b16 %v521
      %v602 = vunpack.c.l.b16 %v522
      %v603 = vunpack.c.h.b16 %v522
      %v604 = vunpack.c.l.b16 %v523
      %v605 = vunpack.c.h.b16 %v523
      %v606 = vunpack.c.l.b16 %v524
      %v607 = vunpack.c.h.b16 %v524
      %v608 = vunpack.c.l.b16 %v525
      %v609 = vunpack.c.h.b16 %v525
      %v610 = vunpack.c.l.b16 %v526
      %v611 = vunpack.c.h.b16 %v526
      %v612 = vunpack.c.l.b16 %v527
      %v613 = vunpack.c.h.b16 %v527
      %v614 = vunpack.c.l.b16 %v528
      %v615 = vunpack.c.h.b16 %v528
      %v616 = vunpack.c.l.b16 %v529
      %v617 = vunpack.c.h.b16 %v529
      %v618 = vunpack.c.l.b16 %v530
      %v619 = vunpack.c.h.b16 %v530
      %v620 = vunpack.c.l.b16 %v531
      %v621 = vunpack.c.h.b16 %v531
      %v622 = vunpack.c.l.b16 %v532
      %v623 = vunpack.c.h.b16 %v532
      %v624 = vunpack.c.l.b16 %v533
      %v625 = vunpack.c.h.b16 %v533
      %v626 = vunpack.c.l.b16 %v534
      %v627 = vunpack.c.h.b16 %v534
      %v628 = vunpack.c.l.b16 %v535
      %v629 = vunpack.c.h.b16 %v535
      %v630 = vunpack.c.l.b16 %v536
      %v631 = vunpack.c.h.b16 %v536
      %v632 = vunpack.c.l.b16 %v537
      %v633 = vunpack.c.h.b16 %v537
      %v634 = vunpack.c.l.b16 %v538
      %v635 = vunpack.c.h.b16 %v538
      %v636 = vunpack.c.l.b16 %v539
      %v637 = vunpack.c.h.b16 %v539
      %v638 = vunpack.c.l.b16 %v540
      %v639 = vunpack.c.h.b16 %v540
      %v640 = vunpack.c.l.b16 %v541
      %v641 = vunpack.c.h.b16 %v541
      %v642 = vunpack.c.l.b16 %v542
      %v643 = vunpack.c.h.b16 %v542
      %v644 = vunpack.c.l.b16 %v543
      %v645 = vunpack.c.h.b16 %v543
      %v646 = vpack.c.b16 %v584, %v582
      %v647 = vpack.c.b16 %v585, %v583
      %v648 = vpack.c.b16 %v588, %v586
      %v649 = vpack.c.b16 %v589, %v587
      %v650 = vpack.c.b16 %v592, %v590
      %v651 = vpack.c.b16 %v593, %v591
      %v652 = vpack.c.b16 %v596, %v594
      %v653 = vpack.c.b16 %v597, %v595
      %v654 = vpack.c.b16 %v600, %v598
      %v655 = vpack.c.b16 %v601, %v599
      %v656 = vpack.c.b16 %v604, %v602
      %v657 = vpack.c.b16 %v605, %v603
      %v658 = vpack.c.b16 %v608, %v606
      %v659 = vpack.c.b16 %v609, %v607
      %v660 = vpack.c.b16 %v612, %v610
      %v661 = vpack.c.b16 %v613, %v611
      %v662 = vpack.c.b16 %v616, %v614
      %v663 = vpack.c.b16 %v617, %v615
      %v664 = vpack.c.b16 %v620, %v618
      %v665 = vpack.c.b16 %v621, %v619
      %v666 = vpack.c.b16 %v624, %v622
      %v667 = vpack.c.b16 %v625, %v623
      %v668 = vpack.c.b16 %v628, %v626
      %v669 = vpack.c.b16 %v629, %v627
      %v670 = vpack.c.b16 %v632, %v630
      %v671 = vpack.c.b16 %v633, %v631
      %v672 = vpack.c.b16 %v636, %v634
      %v673 = vpack.c.b16 %v637, %v635
      %v674 = vpack.c.b16 %v640, %v638
      %v675 = vpack.c.b16 %v641, %v639
      %v676 = vpack.c.b16 %v644, %v642
      %v677 = vpack.c.b16 %v645, %v643
      %710 = vmatpush.bf16.msra.mxu0 %v660
      %711 = vmatpush.bf16.msra.mxu0 %v658
      %712 = vmatpush.bf16.msra.mxu0 %v656
      %713 = vmatpush.bf16.msra.mxu0 %v654
      %714 = vmatpush.bf16.msra.mxu0 %v652
      %715 = vmatpush.bf16.msra.mxu0 %v650
      %716 = vmatpush.bf16.msra.mxu0 %v648
      %717 = vmatpush.bf16.msra.mxu0 %v646
      %718 = vmatmul.bf16.gmra.mxu0 %v510
      %v719 = vpop.f32.mrf.mxu0
      %v720 = vadd.f32 %v546, %v719
      %v721 = vpop.f32.mrf.mxu0
      %722 = vdwg.mxu0
      %723 = vmatpush.bf16.msra.mxu0 %v676
      %724 = vmatpush.bf16.msra.mxu0 %v674
      %725 = vmatpush.bf16.msra.mxu0 %v672
      %726 = vmatpush.bf16.msra.mxu0 %v670
      %727 = vmatpush.bf16.msra.mxu0 %v668
      %728 = vmatpush.bf16.msra.mxu0 %v666
      %729 = vmatpush.bf16.msra.mxu0 %v664
      %730 = vmatpush.bf16.msra.mxu0 %v662
      %731 = vmatmul.bf16.gmra.mxu0 %v511
      %v732 = vpop.f32.mrf.mxu0
      %v733 = vadd.f32 %v720, %v732
      %v734 = vpop.f32.mrf.mxu0
      %735 = vdwg.mxu0
      %736 = vmatpush.bf16.msra.mxu0 %v661
      %737 = vmatpush.bf16.msra.mxu0 %v659
      %738 = vmatpush.bf16.msra.mxu0 %v657
      %739 = vmatpush.bf16.msra.mxu0 %v655
      %740 = vmatpush.bf16.msra.mxu0 %v653
      %741 = vmatpush.bf16.msra.mxu0 %v651
      %742 = vmatpush.bf16.msra.mxu0 %v649
      %743 = vmatpush.bf16.msra.mxu0 %v647
      %744 = vmatmul.bf16.gmra.mxu0 %v510
      %v745 = vpop.f32.mrf.mxu0
      %v746 = vadd.f32 %v547, %v745
      %v747 = vpop.f32.mrf.mxu0
      %748 = vdwg.mxu0
      %749 = vmatpush.bf16.msra.mxu0 %v677
      %750 = vmatpush.bf16.msra.mxu0 %v675
      %751 = vmatpush.bf16.msra.mxu0 %v673
      %752 = vmatpush.bf16.msra.mxu0 %v671
      %753 = vmatpush.bf16.msra.mxu0 %v669
      %754 = vmatpush.bf16.msra.mxu0 %v667
      %755 = vmatpush.bf16.msra.mxu0 %v665
      %756 = vmatpush.bf16.msra.mxu0 %v663
      %757 = vmatmul.bf16.gmra.mxu0 %v511
      %v758 = vpop.f32.mrf.mxu0
      %v759 = vadd.f32 %v746, %v758
      %v760 = vpop.f32.mrf.mxu0
      %761 = vdwg.mxu0
      %v762 = vmax.f32 %v733, 0.0
      %v763 = vmax.f32 %v759, 0.0
      %v764 = vld [vmem:[%s5] sm:$0x3]
      %v766 = vperm.slane %v764, 0
      %v767 = vperm.slane %v764, 1
      %v770 = vadd.f32 %v762, %v766
      %v771 = vadd.f32 %v763, %v767
      %v772 = vadd.f32 %v770, %v252
      %v773 = vadd.f32 %v771, %v253
      %v774 = vmax.f32 %v772, 0.0
      %v775 = vmax.f32 %v773, 0.0
      %776 = vst [vmem:[%s251] sm:$0xff] %v774
      %777 = vst [vmem:[%s251 + $0x8] sm:$0xff] %v775
      %p778 = scmp.lt.s32.totalorder %s17, 1
      %s779 = scalar_select %p778, %s17, 1
      %s780 = smul.addr %s779, 2
      %s781 = smul.addr %s780, 8
      %s782 = scalar_lea.vmem %s6, %s781
      // Predicated region
      $region45: #{_lambda_.1} parent=43 // pred_check
        %p783 = pneg %p166
      $region46: #{_lambda_.1} parent=43 // pred_check_branch
        %785 = sbr.rel (%p783) target = $region48
      $region47: #{_lambda_.1} parent=43 // pred_region
        _
      $region48: #{_lambda_.1} parent=43 // pred_fallthru
        _
    $region44: #{_lambda_.1} parent=5 // pred_fallthru
      _
    %p786 = scmp.le.s32.totalorder 2, %s12
    // Predicated region
    $region49: #{_lambda_.1} parent=5 // pred_check
      %p787 = pneg %p786
    $region50: #{_lambda_.1} parent=5 // pred_check_branch
      %789 = sbr.rel (%p787) target = $region52
    $region51: #{_lambda_.1} parent=5 // pred_region
      %s790 = ssub.s32 %s12, 2
      // Predicated region
      $region53: #{_lambda_.1} parent=51 // pred_check
        %p791 = pneg %p172
      $region54: #{_lambda_.1} parent=51 // pred_check_branch
        %793 = sbr.rel (%p791) target = $region56
      $region55: #{_lambda_.1} parent=51 // pred_region
        %p794 = scmp.lt.s32.totalorder %s18, 1
        %s795 = scalar_select %p794, %s18, 1
        %s796 = smul.addr %s795, 2
        %s797 = smul.addr %s796, 8
        %s798 = scalar_lea.vmem %s6, %s797
      $region56: #{_lambda_.1} parent=51 // pred_fallthru
        _
    $region52: #{_lambda_.1} parent=5 // pred_fallthru
      _
  $region6: #{_lambda_.1} parent=0 // loop_footer
    %s16 = sadd.s32 1, %s12
  $region7: #{_lambda_.1} parent=0 // loop_footer_branch
    %11 = sbr.rel target = $region3
  $region8: #{_lambda_.1} parent=0 // loop_exit
    _

</llo_original>
